<compile_context>
chip_gen: v6e
topology: v6e:2x2x1
jax: 0.10.0
libtpu: 0.0.40
codegen_flags: <defaults>
</compile_context>

<pallas_src>
import functools

import jax
import jax.numpy as jnp
from jax import lax
from jax.experimental import pallas as pl
from jax.experimental.pallas import tpu as pltpu


def _round_up(x, m):
    return (x + m - 1) // m * m


def _erf(x):
    # Abramowitz & Stegun 7.1.26 (|err| <= 1.5e-7). mul/add/exp on VPU/EUP;
    # the reciprocal goes to the otherwise-idle EUP slot (approx=True).
    a1, a2, a3, a4, a5 = (0.254829592, -0.284496736, 1.421413741,
                          -1.453152027, 1.061405429)
    p = 0.3275911
    s = jnp.where(x < 0.0, -1.0, 1.0)
    z = jnp.abs(x)
    t = pl.reciprocal(1.0 + p * z, approx=True)
    poly = ((((a5 * t + a4) * t + a3) * t + a2) * t + a1) * t
    return s * (1.0 - poly * jnp.exp(-z * z))


def _gelu_exact(x):
    # Matches PyTorch nn.GELU() default (erf-based) to ~1e-6.
    return 0.5 * x * (1.0 + _erf(x * 0.7071067811865476))


def _mlp_kernel(x_ref, w1_ref, b1_ref, w2_ref, b2_ref, o_ref, h_ref):
    # x block: (Cin, TM) with M = H*W on the lane axis (lane-dense, unmasked).
    # Resident weights: w1 (Ch, Cin), w2 (Cout, Ch); biases (Ch, 1), (Cout, 1).
    x = x_ref[...]                                           # native dtype, no upcast
    h = jnp.dot(w1_ref[...], x,
                preferred_element_type=jnp.float32)          # (Ch, TM) f32 acc
    h = h + b1_ref[...].astype(jnp.float32)                  # bias in f32
    h_ref[...] = _gelu_exact(h).astype(h_ref.dtype)          # stage hidden in VMEM
    y = jnp.dot(w2_ref[...], h_ref[...],
                preferred_element_type=jnp.float32)          # (Cout, TM) f32 acc
    y = y + b2_ref[...].astype(jnp.float32)
    o_ref[...] = y.astype(o_ref.dtype)


@functools.partial(jax.jit, static_argnames=("tile_m",))
def mlp_forward(x, w1, b1, w2, b2, *, tile_m=1024):
    """x: (N, Cin, H, W); w1: (Ch, Cin); b1: (Ch,); w2: (Cout, Ch); b2: (Cout,)."""
    N, Cin, H, W = x.shape
    Ch = w1.shape[0]
    Cout = w2.shape[0]
    HW = H * W
    itemsize = jnp.dtype(x.dtype).itemsize

    # --- tile selection (H*W axis on lanes) --------------------------------
    # Per row of M in VMEM: x (2 pipeline bufs) + out (2 bufs) + h scratch.
    per_row = itemsize * (2 * Cin + 2 * Cout + Ch)
    budget = 48 * 1024 * 1024                 # conservative vs v7x's 64 MiB VMEM
    cap = max(128, (budget // per_row) // 128 * 128)
    tm_req = max(128, min(tile_m, cap))
    n_tiles = pl.cdiv(HW, tm_req)
    tm = _round_up(pl.cdiv(HW, n_tiles), 128)  # near-equal tiles -> low pad waste
    HWp = tm * n_tiles

    xr = x.reshape(N, Cin, HW)                 # free reshape: no HBM transpose
    if HWp != HW:
        xr = jnp.pad(xr, ((0, 0), (0, 0), (0, HWp - HW)))

    b1c = b1.reshape(Ch, 1)                    # broadcasts over the lane (M) axis
    b2c = b2.reshape(Cout, 1)

    out = pl.pallas_call(
        _mlp_kernel,
        out_shape=jax.ShapeDtypeStruct((N, Cout, HWp), x.dtype),
        grid_spec=pltpu.PrefetchScalarGridSpec(
            num_scalar_prefetch=0,
            grid=(N, n_tiles),
            in_specs=[
                pl.BlockSpec((None, Cin, tm), lambda n, i: (n, 0, i)),
                pl.BlockSpec((Ch, Cin), lambda n, i: (0, 0)),    # resident weight
                pl.BlockSpec((Ch, 1), lambda n, i: (0, 0)),      # resident bias
                pl.BlockSpec((Cout, Ch), lambda n, i: (0, 0)),   # resident weight
                pl.BlockSpec((Cout, 1), lambda n, i: (0, 0)),    # resident bias
            ],
            out_specs=pl.BlockSpec((None, Cout, tm), lambda n, i: (n, 0, i)),
            scratch_shapes=[pltpu.VMEM((Ch, tm), x.dtype)],      # staged hidden
        ),
        compiler_params=pltpu.CompilerParams(
            dimension_semantics=("parallel", "parallel"),        # megacore / 2 TCs
            vmem_limit_bytes=budget,
        ),
    )(xr, w1, b1c, w2, b2c)

    return out[:, :, :HW].reshape(N, Cout, H, W)


def _reference(x, w1, b1, w2, b2):
    """Pure-JAX reference: 1x1 conv == channel matmul, exact (erf) GELU."""
    xf = x.astype(jnp.float32)
    h = jnp.einsum("nchw,kc->nkhw", xf, w1.astype(jnp.float32),
                   precision=lax.Precision.HIGHEST)
    h = h + b1.reshape(1, -1, 1, 1)
    h = jax.nn.gelu(h, approximate=False)   # PyTorch nn.GELU default (erf)
    y = jnp.einsum("nchw,kc->nkhw", h, w2.astype(jnp.float32),
                   precision=lax.Precision.HIGHEST)
    y = y + b2.reshape(1, -1, 1, 1)
    return y.astype(x.dtype)


if __name__ == "__main__":
    key = jax.random.PRNGKey(0)
    k_x, k_w1, k_b1, k_w2, k_b2 = jax.random.split(key, 5)

    # Small shapes consistent with the module: in_features=32, hidden=64,
    # out_features=32, batch=2, spatial=16x16.
    N, Cin, H, W = 2, 32, 16, 16
    Ch, Cout = 64, 32

    x = jax.random.normal(k_x, (N, Cin, H, W), dtype=jnp.float32)
    w1 = 0.1 * jax.random.normal(k_w1, (Ch, Cin), dtype=jnp.float32)
    b1 = 0.1 * jax.random.normal(k_b1, (Ch,), dtype=jnp.float32)
    w2 = 0.1 * jax.random.normal(k_w2, (Cout, Ch), dtype=jnp.float32)
    b2 = 0.1 * jax.random.normal(k_b2, (Cout,), dtype=jnp.float32)

    y = mlp_forward(x, w1, b1, w2, b2)
    y = jax.block_until_ready(y)

    y_ref = _reference(x, w1, b1, w2, b2)
    assert y.shape == (N, Cout, H, W) and y.dtype == x.dtype
    # Tolerance covers default-precision MXU operand rounding (~bf16) and the
    # polynomial erf / approx reciprocal; not bit-exact vs PyTorch fp32.
    assert jnp.allclose(y, y_ref, atol=5e-3, rtol=5e-3), "mismatch vs reference"

    print("KERNEL_OK")
</pallas_src>

<mosaic_0001>
module attributes {stable_mosaic.version = 11 : i64} {
  func.func @_mlp_kernel(%arg0: i32, %arg1: i32, %arg2: memref<1x32x256xf32, #tpu.memory_space<vmem>>, %arg3: memref<64x32xf32, #tpu.memory_space<vmem>>, %arg4: memref<64x1xf32, #tpu.memory_space<vmem>>, %arg5: memref<32x64xf32, #tpu.memory_space<vmem>>, %arg6: memref<32x1xf32, #tpu.memory_space<vmem>>, %arg7: memref<1x32x256xf32, #tpu.memory_space<vmem>>, %arg8: memref<64x256xf32, #tpu.memory_space<vmem>>) attributes {dimension_semantics = [#tpu.dimension_semantics<parallel>, #tpu.dimension_semantics<parallel>], iteration_bounds = array<i64: 2, 1>, scalar_prefetch = 0 : i64, scratch_operands = 1 : i64, tpu.core_type = #tpu.core_type<tc>, window_params = [{transform_indices = @transform_0, window_bounds = array<i64: 1, 32, 256>}, {pipeline_mode = #tpu.pipeline_mode<synchronous>, transform_indices = @transform_1, window_bounds = array<i64: 64, 32>}, {pipeline_mode = #tpu.pipeline_mode<synchronous>, transform_indices = @transform_2, window_bounds = array<i64: 64, 1>}, {pipeline_mode = #tpu.pipeline_mode<synchronous>, transform_indices = @transform_3, window_bounds = array<i64: 32, 64>}, {pipeline_mode = #tpu.pipeline_mode<synchronous>, transform_indices = @transform_4, window_bounds = array<i64: 32, 1>}, {transform_indices = @transform_5, window_bounds = array<i64: 1, 32, 256>}]} {
    %c0 = arith.constant 0 : index
    %c0_0 = arith.constant 0 : index
    %c0_1 = arith.constant 0 : index
    %0 = vector.load %arg2[%c0, %c0_0, %c0_1] : memref<1x32x256xf32, #tpu.memory_space<vmem>>, vector<1x32x256xf32>
    %1 = vector.shape_cast %0 : vector<1x32x256xf32> to vector<32x256xf32>
    %c0_2 = arith.constant 0 : index
    %c0_3 = arith.constant 0 : index
    %2 = vector.load %arg3[%c0_2, %c0_3] : memref<64x32xf32, #tpu.memory_space<vmem>>, vector<64x32xf32>
    %cst = arith.constant dense<0.000000e+00> : vector<64x256xf32>
    %3 = tpu.matmul %2, %1, %cst {dimension_numbers = #tpu.dot_dimension_numbers<[1], [0], [0], [1], [0, 0, 1, 1], [], []>} : vector<64x32xf32>, vector<32x256xf32>, vector<64x256xf32> -> vector<64x256xf32>
    %c0_4 = arith.constant 0 : index
    %c0_5 = arith.constant 0 : index
    %4 = vector.load %arg4[%c0_4, %c0_5] : memref<64x1xf32, #tpu.memory_space<vmem>>, vector<64x1xf32>
    %5 = vector.broadcast %4 : vector<64x1xf32> to vector<64x256xf32>
    %6 = arith.addf %3, %5 : vector<64x256xf32>
    %cst_6 = arith.constant 5.000000e-01 : f32
    %7 = vector.broadcast %cst_6 : f32 to vector<64x256xf32>
    %8 = arith.mulf %7, %6 : vector<64x256xf32>
    %cst_7 = arith.constant 0.707106769 : f32
    %9 = vector.broadcast %cst_7 : f32 to vector<64x256xf32>
    %10 = arith.mulf %6, %9 : vector<64x256xf32>
    %cst_8 = arith.constant 0.000000e+00 : f32
    %11 = vector.broadcast %cst_8 : f32 to vector<64x256xf32>
    %12 = arith.cmpf olt, %10, %11 : vector<64x256xf32>
    %cst_9 = arith.constant -1.000000e+00 : f32
    %cst_10 = arith.constant 1.000000e+00 : f32
    %13 = vector.broadcast %cst_9 : f32 to vector<64x256xf32>
    %14 = vector.broadcast %cst_10 : f32 to vector<64x256xf32>
    %15 = arith.select %12, %13, %14 : vector<64x256xi1>, vector<64x256xf32>
    %16 = math.absf %10 : vector<64x256xf32>
    %cst_11 = arith.constant 0.327591091 : f32
    %17 = vector.broadcast %cst_11 : f32 to vector<64x256xf32>
    %18 = arith.mulf %17, %16 : vector<64x256xf32>
    %cst_12 = arith.constant 1.000000e+00 : f32
    %19 = vector.broadcast %cst_12 : f32 to vector<64x256xf32>
    %20 = arith.addf %19, %18 : vector<64x256xf32>
    %21 = tpu.reciprocal %20 {approx = true} : vector<64x256xf32> -> vector<64x256xf32>
    %cst_13 = arith.constant 1.06140542 : f32
    %22 = vector.broadcast %cst_13 : f32 to vector<64x256xf32>
    %23 = arith.mulf %22, %21 : vector<64x256xf32>
    %cst_14 = arith.constant -1.45315206 : f32
    %24 = vector.broadcast %cst_14 : f32 to vector<64x256xf32>
    %25 = arith.addf %23, %24 : vector<64x256xf32>
    %26 = arith.mulf %25, %21 : vector<64x256xf32>
    %cst_15 = arith.constant 1.42141378 : f32
    %27 = vector.broadcast %cst_15 : f32 to vector<64x256xf32>
    %28 = arith.addf %26, %27 : vector<64x256xf32>
    %29 = arith.mulf %28, %21 : vector<64x256xf32>
    %cst_16 = arith.constant -0.284496725 : f32
    %30 = vector.broadcast %cst_16 : f32 to vector<64x256xf32>
    %31 = arith.addf %29, %30 : vector<64x256xf32>
    %32 = arith.mulf %31, %21 : vector<64x256xf32>
    %cst_17 = arith.constant 0.254829586 : f32
    %33 = vector.broadcast %cst_17 : f32 to vector<64x256xf32>
    %34 = arith.addf %32, %33 : vector<64x256xf32>
    %35 = arith.mulf %34, %21 : vector<64x256xf32>
    %cst_18 = arith.constant 0.000000e+00 : f32
    %36 = vector.broadcast %cst_18 : f32 to vector<64x256xf32>
    %37 = arith.subf %36, %16 : vector<64x256xf32>
    %38 = arith.mulf %37, %16 : vector<64x256xf32>
    %39 = math.exp %38 : vector<64x256xf32>
    %40 = arith.mulf %35, %39 : vector<64x256xf32>
    %cst_19 = arith.constant 1.000000e+00 : f32
    %41 = vector.broadcast %cst_19 : f32 to vector<64x256xf32>
    %42 = arith.subf %41, %40 : vector<64x256xf32>
    %43 = arith.mulf %15, %42 : vector<64x256xf32>
    %cst_20 = arith.constant 1.000000e+00 : f32
    %44 = vector.broadcast %cst_20 : f32 to vector<64x256xf32>
    %45 = arith.addf %44, %43 : vector<64x256xf32>
    %46 = arith.mulf %8, %45 : vector<64x256xf32>
    %c0_21 = arith.constant 0 : index
    %c0_22 = arith.constant 0 : index
    %47 = vector.load %arg8[%c0_21, %c0_22] : memref<64x256xf32, #tpu.memory_space<vmem>>, vector<64x256xf32>
    tpu.vector_store %arg8[%c0_21, %c0_22], %46 {strides = array<i32>} : memref<64x256xf32, #tpu.memory_space<vmem>>, vector<64x256xf32>,
    %c0_23 = arith.constant 0 : index
    %c0_24 = arith.constant 0 : index
    %48 = vector.load %arg5[%c0_23, %c0_24] : memref<32x64xf32, #tpu.memory_space<vmem>>, vector<32x64xf32>
    %c0_25 = arith.constant 0 : index
    %c0_26 = arith.constant 0 : index
    %49 = vector.load %arg8[%c0_25, %c0_26] : memref<64x256xf32, #tpu.memory_space<vmem>>, vector<64x256xf32>
    %cst_27 = arith.constant dense<0.000000e+00> : vector<32x256xf32>
    %50 = tpu.matmul %48, %49, %cst_27 {dimension_numbers = #tpu.dot_dimension_numbers<[1], [0], [0], [1], [0, 0, 1, 1], [], []>} : vector<32x64xf32>, vector<64x256xf32>, vector<32x256xf32> -> vector<32x256xf32>
    %c0_28 = arith.constant 0 : index
    %c0_29 = arith.constant 0 : index
    %51 = vector.load %arg6[%c0_28, %c0_29] : memref<32x1xf32, #tpu.memory_space<vmem>>, vector<32x1xf32>
    %52 = vector.broadcast %51 : vector<32x1xf32> to vector<32x256xf32>
    %53 = arith.addf %50, %52 : vector<32x256xf32>
    %c0_30 = arith.constant 0 : index
    %c0_31 = arith.constant 0 : index
    %c0_32 = arith.constant 0 : index
    %54 = vector.load %arg7[%c0_30, %c0_31, %c0_32] : memref<1x32x256xf32, #tpu.memory_space<vmem>>, vector<1x32x256xf32>
    %55 = vector.shape_cast %54 : vector<1x32x256xf32> to vector<32x256xf32>
    %56 = vector.shape_cast %53 : vector<32x256xf32> to vector<1x32x256xf32>
    tpu.vector_store %arg7[%c0_30, %c0_31, %c0_32], %56 {strides = array<i32>} : memref<1x32x256xf32, #tpu.memory_space<vmem>>, vector<1x32x256xf32>,
    return
  }
  func.func @transform_0(%arg0: i32, %arg1: i32) -> (i32, i32, i32) {
    %c0_i32 = arith.constant 0 : i32
    %c0_i32_0 = arith.constant 0 : i32
    return %arg0, %c0_i32, %arg1 : i32, i32, i32
  }
  func.func @transform_1(%arg0: i32, %arg1: i32) -> (i32, i32) {
    %c0_i32 = arith.constant 0 : i32
    %c0_i32_0 = arith.constant 0 : i32
    %c0_i32_1 = arith.constant 0 : i32
    return %c0_i32, %c0_i32_0 : i32, i32
  }
  func.func @transform_2(%arg0: i32, %arg1: i32) -> (i32, i32) {
    %c0_i32 = arith.constant 0 : i32
    %c0_i32_0 = arith.constant 0 : i32
    %c0_i32_1 = arith.constant 0 : i32
    return %c0_i32, %c0_i32_0 : i32, i32
  }
  func.func @transform_3(%arg0: i32, %arg1: i32) -> (i32, i32) {
    %c0_i32 = arith.constant 0 : i32
    %c0_i32_0 = arith.constant 0 : i32
    %c0_i32_1 = arith.constant 0 : i32
    return %c0_i32, %c0_i32_0 : i32, i32
  }
  func.func @transform_4(%arg0: i32, %arg1: i32) -> (i32, i32) {
    %c0_i32 = arith.constant 0 : i32
    %c0_i32_0 = arith.constant 0 : i32
    %c0_i32_1 = arith.constant 0 : i32
    return %c0_i32, %c0_i32_0 : i32, i32
  }
  func.func @transform_5(%arg0: i32, %arg1: i32) -> (i32, i32, i32) {
    %c0_i32 = arith.constant 0 : i32
    %c0_i32_0 = arith.constant 0 : i32
    return %arg0, %c0_i32, %arg1 : i32, i32, i32
  }
}

</mosaic_0001>

<llo_original>
// kernel: mlp_forward.1
$region0: #{mlp_forward.1}
  #allocation0 [shape = 'u32[]', space=smem, size = 0x4, offset = 0x4, fixed_abs, tag = 'smem constant byte address 0x4 - core index']
  #allocation1 [shape = 'u32[144,128]{1,0:T(1,128)}', space=vmem, size = 0x12000, scoped, tag = 'internal scratch']
  #allocation2 [shape = 'f32[64,256]{1,0:T(8,128)}', space=vmem, size = 0x10000, scoped, tag = 'scratch operand']
  %s0 = inlined_call_operand.vmem [shape: f32[2,32,256], index: 0, kind: input, shape index: {}]
  %s1 = inlined_call_operand.vmem [shape: f32[64,32], index: 1, kind: input, shape index: {}]
  %s2 = inlined_call_operand.vmem [shape: f32[64,1], index: 2, kind: input, shape index: {}]
  %s3 = inlined_call_operand.vmem [shape: f32[32,64], index: 3, kind: input, shape index: {}]
  %s4 = inlined_call_operand.vmem [shape: f32[32,1], index: 4, kind: input, shape index: {}]
  %s5 = inlined_call_operand.vmem [shape: f32[2,32,256], index: 5, kind: output, shape index: {}]
  %s6 = sld [smem:[#allocation0]]
  $region53: #{mlp_forward.1} parent=0
    _
  %s8 = ssub.s32 1, %s6
  %s9 = scalar_select 0, %s8, %s6
  loop: start=0, step=1, limit=4
  $region2: #{mlp_forward.1} parent=0 // loop_pre_header
    _
  $region3: #{mlp_forward.1} parent=0 // loop_header
    %s11 = sphi 0, %s15
    %p12 = scmp.ge.s32.totalorder %s11, 4
    %s18 = sphi 0, %s30
    %s19 = sphi 0, %s26
    %s20 = sphi 0, %s18
    %s21 = sphi 0, %s19
    %s22 = sphi 0, %s20
    %s23 = sphi 0, %s21
    %s35 = sphi 0, %s37
    %s38 = sphi 0, %s35
    %s39 = sphi 0, %s38
    %s55 = sphi 0, %s39
    %s59 = sphi 0, %s59
    %s61 = sphi 0, %s59
    %s62 = sphi 0, %s61
    %s76 = sphi 0, %s62
    %s80 = sphi 0, %s80
    %s82 = sphi 0, %s80
    %s83 = sphi 0, %s82
    %s97 = sphi 0, %s83
    %s101 = sphi 0, %s101
    %s103 = sphi 0, %s101
    %s104 = sphi 0, %s103
    %s118 = sphi 0, %s104
    %s122 = sphi 0, %s122
    %s124 = sphi 0, %s122
    %s125 = sphi 0, %s124
    %s139 = sphi 0, %s125
    %s147 = sphi 0, %s149
    %s150 = sphi 0, %s147
    %s151 = sphi 0, %s150
    %s167 = sphi 0, %s151
  $region4: #{mlp_forward.1} parent=0 // loop_header_branch
    %14 = sbr.rel (%p12) target = $region8
  $region5: #{mlp_forward.1} parent=0 // loop_body
    %s16 = ssub.s32 %s11, 1
    %s17 = ssub.s32 %s11, 2
    %s24 = sadd.s32 1, %s19
    %p25 = scmp.ge.s32.totalorder %s24, 1
    %s26 = scalar_select %p25, 0, %s24
    %s27 = sadd.s32 1, %s18
    %s28 = scalar_select %p25, %s27, %s18
    %p29 = scmp.ge.s32.totalorder %s28, 2
    %s30 = scalar_select %p29, 0, %s28
    %s31 = ssub.s32 %s18, %s30
    %s32 = ssub.s32 %s19, %s26
    %s33 = sor.u32 %s31, %s32
    %p34 = scmp.eq.s32.totalorder %s33, 0
    %s36 = sadd.s32 %s35, 1
    %s37 = scalar_select %p34, %s35, %s36
    %p40 = pneg %p34
    %p41 = scmp.eq.s32.totalorder %s11, 1
    %p42 = por %p40, %p41
    %p43 = scmp.ne.s32.totalorder %s35, %s38
    %p44 = scmp.eq.s32.totalorder %s11, 0
    %p45 = por %p43, %p44
    %p46 = scmp.ne.s32.totalorder %s35, %s38
    %p47 = scmp.eq.s32.totalorder %s16, 1
    %p48 = por %p46, %p47
    %p49 = scmp.ne.s32.totalorder %s38, %s39
    %p50 = scmp.eq.s32.totalorder %s16, 0
    %p51 = por %p49, %p50
    %p52 = scmp.ne.s32.totalorder %s38, %s39
    %p53 = scmp.eq.s32.totalorder %s17, 1
    %p54 = por %p52, %p53
    %p56 = scmp.ne.s32.totalorder %s39, %s55
    %p57 = scmp.eq.s32.totalorder %s17, 0
    %p58 = por %p56, %p57
    %s60 = sadd.s32 %s59, 1
    %p63 = scmp.eq.s32.totalorder %s11, 1
    %p64 = scmp.ne.s32.totalorder %s59, %s61
    %p65 = scmp.eq.s32.totalorder %s11, 0
    %p66 = por %p64, %p65
    %p67 = scmp.ne.s32.totalorder %s59, %s61
    %p68 = scmp.eq.s32.totalorder %s16, 1
    %p69 = por %p67, %p68
    %p70 = scmp.ne.s32.totalorder %s61, %s62
    %p71 = scmp.eq.s32.totalorder %s16, 0
    %p72 = por %p70, %p71
    %p73 = scmp.ne.s32.totalorder %s61, %s62
    %p74 = scmp.eq.s32.totalorder %s17, 1
    %p75 = por %p73, %p74
    %p77 = scmp.ne.s32.totalorder %s62, %s76
    %p78 = scmp.eq.s32.totalorder %s17, 0
    %p79 = por %p77, %p78
    %s81 = sadd.s32 %s80, 1
    %p84 = scmp.eq.s32.totalorder %s11, 1
    %p85 = scmp.ne.s32.totalorder %s80, %s82
    %p86 = scmp.eq.s32.totalorder %s11, 0
    %p87 = por %p85, %p86
    %p88 = scmp.ne.s32.totalorder %s80, %s82
    %p89 = scmp.eq.s32.totalorder %s16, 1
    %p90 = por %p88, %p89
    %p91 = scmp.ne.s32.totalorder %s82, %s83
    %p92 = scmp.eq.s32.totalorder %s16, 0
    %p93 = por %p91, %p92
    %p94 = scmp.ne.s32.totalorder %s82, %s83
    %p95 = scmp.eq.s32.totalorder %s17, 1
    %p96 = por %p94, %p95
    %p98 = scmp.ne.s32.totalorder %s83, %s97
    %p99 = scmp.eq.s32.totalorder %s17, 0
    %p100 = por %p98, %p99
    %s102 = sadd.s32 %s101, 1
    %p105 = scmp.eq.s32.totalorder %s11, 1
    %p106 = scmp.ne.s32.totalorder %s101, %s103
    %p107 = scmp.eq.s32.totalorder %s11, 0
    %p108 = por %p106, %p107
    %p109 = scmp.ne.s32.totalorder %s101, %s103
    %p110 = scmp.eq.s32.totalorder %s16, 1
    %p111 = por %p109, %p110
    %p112 = scmp.ne.s32.totalorder %s103, %s104
    %p113 = scmp.eq.s32.totalorder %s16, 0
    %p114 = por %p112, %p113
    %p115 = scmp.ne.s32.totalorder %s103, %s104
    %p116 = scmp.eq.s32.totalorder %s17, 1
    %p117 = por %p115, %p116
    %p119 = scmp.ne.s32.totalorder %s104, %s118
    %p120 = scmp.eq.s32.totalorder %s17, 0
    %p121 = por %p119, %p120
    %s123 = sadd.s32 %s122, 1
    %p126 = scmp.eq.s32.totalorder %s11, 1
    %p127 = scmp.ne.s32.totalorder %s122, %s124
    %p128 = scmp.eq.s32.totalorder %s11, 0
    %p129 = por %p127, %p128
    %p130 = scmp.ne.s32.totalorder %s122, %s124
    %p131 = scmp.eq.s32.totalorder %s16, 1
    %p132 = por %p130, %p131
    %p133 = scmp.ne.s32.totalorder %s124, %s125
    %p134 = scmp.eq.s32.totalorder %s16, 0
    %p135 = por %p133, %p134
    %p136 = scmp.ne.s32.totalorder %s124, %s125
    %p137 = scmp.eq.s32.totalorder %s17, 1
    %p138 = por %p136, %p137
    %p140 = scmp.ne.s32.totalorder %s125, %s139
    %p141 = scmp.eq.s32.totalorder %s17, 0
    %p142 = por %p140, %p141
    %s143 = ssub.s32 %s18, %s30
    %s144 = ssub.s32 %s19, %s26
    %s145 = sor.u32 %s143, %s144
    %p146 = scmp.eq.s32.totalorder %s145, 0
    %s148 = sadd.s32 %s147, 1
    %s149 = scalar_select %p146, %s147, %s148
    %p152 = pneg %p146
    %p153 = scmp.eq.s32.totalorder %s11, 1
    %p154 = por %p152, %p153
    %p155 = scmp.ne.s32.totalorder %s147, %s150
    %p156 = scmp.eq.s32.totalorder %s11, 0
    %p157 = por %p155, %p156
    %p158 = scmp.ne.s32.totalorder %s147, %s150
    %p159 = scmp.eq.s32.totalorder %s16, 1
    %p160 = por %p158, %p159
    %p161 = scmp.ne.s32.totalorder %s150, %s151
    %p162 = scmp.eq.s32.totalorder %s16, 0
    %p163 = por %p161, %p162
    %p164 = scmp.ne.s32.totalorder %s150, %s151
    %p165 = scmp.eq.s32.totalorder %s17, 1
    %p166 = por %p164, %p165
    %p168 = scmp.ne.s32.totalorder %s151, %s167
    %p169 = scmp.eq.s32.totalorder %s17, 0
    %p170 = por %p168, %p169
    %p171 = scmp.le.s32.totalorder 1, %s11
    %p172 = scmp.lt.s32.totalorder %s11, 3
    %p173 = pnand %p171, %p172
    %p174 = pneg %p173
    // Predicated region
    $region9: #{mlp_forward.1} parent=5 // pred_check
      _
    $region10: #{mlp_forward.1} parent=5 // pred_check_branch
      %176 = sbr.rel (%p173) target = $region12
    $region11: #{mlp_forward.1} parent=5 // pred_region
      %s177 = ssub.s32 %s11, 1
      // Predicated region
      $region13: #{mlp_forward.1} parent=11 // pred_check
        %p178 = pneg %p72
      $region14: #{mlp_forward.1} parent=11 // pred_check_branch
        %180 = sbr.rel (%p178) target = $region16
      $region15: #{mlp_forward.1} parent=11 // pred_region
        _
      $region16: #{mlp_forward.1} parent=11 // pred_fallthru
        _
      // Predicated region
      $region17: #{mlp_forward.1} parent=11 // pred_check
        %p181 = pneg %p93
      $region18: #{mlp_forward.1} parent=11 // pred_check_branch
        %183 = sbr.rel (%p181) target = $region20
      $region19: #{mlp_forward.1} parent=11 // pred_region
        _
      $region20: #{mlp_forward.1} parent=11 // pred_fallthru
        _
      // Predicated region
      $region21: #{mlp_forward.1} parent=11 // pred_check
        %p184 = pneg %p114
      $region22: #{mlp_forward.1} parent=11 // pred_check_branch
        %186 = sbr.rel (%p184) target = $region24
      $region23: #{mlp_forward.1} parent=11 // pred_region
        _
      $region24: #{mlp_forward.1} parent=11 // pred_fallthru
        _
      // Predicated region
      $region25: #{mlp_forward.1} parent=11 // pred_check
        %p187 = pneg %p135
      $region26: #{mlp_forward.1} parent=11 // pred_check_branch
        %189 = sbr.rel (%p187) target = $region28
      $region27: #{mlp_forward.1} parent=11 // pred_region
        _
      $region28: #{mlp_forward.1} parent=11 // pred_fallthru
        _
    $region12: #{mlp_forward.1} parent=5 // pred_fallthru
      _
    %p190 = scmp.lt.s32.totalorder %s11, 2
    // Predicated region
    $region29: #{mlp_forward.1} parent=5 // pred_check
      %p191 = pneg %p190
    $region30: #{mlp_forward.1} parent=5 // pred_check_branch
      %193 = sbr.rel (%p191) target = $region32
    $region31: #{mlp_forward.1} parent=5 // pred_region
      // Predicated region
      $region33: #{mlp_forward.1} parent=31 // pred_check
        %p194 = pneg %p45
      $region34: #{mlp_forward.1} parent=31 // pred_check_branch
        %196 = sbr.rel (%p194) target = $region36
      $region35: #{mlp_forward.1} parent=31 // pred_region
        %s197 = smul.u32 2, %s19
        %p198 = scmp.lt.s32.totalorder %s18, 1
        %s199 = scalar_select %p198, %s18, 1
        %p200 = scmp.lt.s32.totalorder %s197, 1
        %s201 = scalar_select %p200, %s197, 1
        %s202 = smul.addr %s199, 8
        %s203 = sadd.s32 %s201, %s202
        %s204 = smul.addr %s203, 8
        %s205 = scalar_lea.vmem %s0, %s204
        %s206 = smul.u32 2, %s19
      $region36: #{mlp_forward.1} parent=31 // pred_fallthru
        _
    $region32: #{mlp_forward.1} parent=5 // pred_fallthru
      _
    %p207 = scmp.le.s32.totalorder 1, %s11
    %p208 = scmp.lt.s32.totalorder %s11, 3
    %p209 = pnand %p207, %p208
    %p210 = pneg %p209
    // Predicated region
    $region37: #{mlp_forward.1} parent=5 // pred_check
      _
    $region38: #{mlp_forward.1} parent=5 // pred_check_branch
      %212 = sbr.rel (%p209) target = $region40
    $region39: #{mlp_forward.1} parent=5 // pred_region
      %s213 = ssub.s32 %s11, 1
      %s214 = smul.u32 2, %s21
      %p215 = scmp.lt.s32.totalorder %s20, 1
      %s216 = scalar_select %p215, %s20, 1
      %p217 = scmp.lt.s32.totalorder %s214, 1
      %s218 = scalar_select %p217, %s214, 1
      %s219 = smul.addr %s216, 8
      %s220 = sadd.s32 %s218, %s219
      %s221 = smul.addr %s220, 8
      %s222 = scalar_lea.vmem %s0, %s221
      %p223 = pneg %p51
      %p224 = pneg %p48
      %p225 = pneg %p72
      %p226 = pneg %p69
      %p227 = pneg %p93
      %p228 = pneg %p90
      %p229 = pneg %p114
      %p230 = pneg %p111
      %p231 = pneg %p135
      %p232 = pneg %p132
      %p233 = pneg %p163
      %p234 = pneg %p160
      %s235 = smul.u32 2, %s21
      %p236 = scmp.lt.s32.totalorder %s20, 1
      %s237 = scalar_select %p236, %s20, 1
      %p238 = scmp.lt.s32.totalorder %s235, 1
      %s239 = scalar_select %p238, %s235, 1
      %s240 = smul.addr %s237, 8
      %s241 = sadd.s32 %s239, %s240
      %s242 = smul.addr %s241, 8
      %s243 = scalar_lea.vmem %s5, %s242
      %s244 = smul.u32 2, %s21
      %p245 = scmp.lt.s32.totalorder %s20, 1
      %s246 = scalar_select %p245, %s20, 1
      %p247 = scmp.lt.s32.totalorder %s244, 1
      %s248 = scalar_select %p247, %s244, 1
      %s249 = smul.addr %s246, 8
      %s250 = sadd.s32 %s248, %s249
      %s251 = smul.addr %s250, 8
      %s252 = scalar_lea.vmem %s0, %s251
      %s253 = smul.u32 2, %s21
      %s254 = smul.u32 2, %s21
      %p255 = scmp.lt.s32.totalorder %s20, 1
      %s256 = scalar_select %p255, %s20, 1
      %p257 = scmp.lt.s32.totalorder %s254, 1
      %s258 = scalar_select %p257, %s254, 1
      %s259 = smul.addr %s256, 8
      %s260 = sadd.s32 %s258, %s259
      %s261 = smul.addr %s260, 8
      %s262 = scalar_lea.vmem %s5, %s261
      %s263 = smul.u32 2, %s21
      %v264 = vld [vmem:[%s252] sm:$0xff]
      %v265 = vld [vmem:[%s252 + $0x8] sm:$0xff]
      %v266 = vld [vmem:[%s252 + $0x10] sm:$0xff]
      %v267 = vld [vmem:[%s252 + $0x18] sm:$0xff]
      %v268 = vld [vmem:[%s252 + $0x20] sm:$0xff]
      %v269 = vld [vmem:[%s252 + $0x28] sm:$0xff]
      %v270 = vld [vmem:[%s252 + $0x30] sm:$0xff]
      %v271 = vld [vmem:[%s252 + $0x38] sm:$0xff]
      %v272 = vld [vmem:[%s1] sm:$0xff]
      %v273 = vld [vmem:[%s1 + $0x8] sm:$0xff]
      %v274 = vld [vmem:[%s1 + $0x10] sm:$0xff]
      %v275 = vld [vmem:[%s1 + $0x18] sm:$0xff]
      %v276 = vld [vmem:[%s1 + $0x20] sm:$0xff]
      %v277 = vld [vmem:[%s1 + $0x28] sm:$0xff]
      %v278 = vld [vmem:[%s1 + $0x30] sm:$0xff]
      %v279 = vld [vmem:[%s1 + $0x38] sm:$0xff]
      %v280 = vld [vmem:[%s2] sm:$0xff]
      %v281 = vld [vmem:[%s2 + $0x8] sm:$0xff]
      %v282 = vld [vmem:[%s2 + $0x10] sm:$0xff]
      %v283 = vld [vmem:[%s2 + $0x18] sm:$0xff]
      %v284 = vld [vmem:[%s2 + $0x20] sm:$0xff]
      %v285 = vld [vmem:[%s2 + $0x28] sm:$0xff]
      %v286 = vld [vmem:[%s2 + $0x30] sm:$0xff]
      %v287 = vld [vmem:[%s2 + $0x38] sm:$0xff]
      %289 = vset.pattern.permute.xlu0 0
      %290 = vperm.xlu0 %289, %v280
      %v291 = vpop.permute.xlu0 %290
      %294 = vset.pattern.permute.xlu0 0
      %295 = vperm.xlu0 %294, %v281
      %v296 = vpop.permute.xlu0 %295
      %299 = vset.pattern.permute.xlu0 0
      %300 = vperm.xlu0 %299, %v282
      %v301 = vpop.permute.xlu0 %300
      %304 = vset.pattern.permute.xlu0 0
      %305 = vperm.xlu0 %304, %v283
      %v306 = vpop.permute.xlu0 %305
      %309 = vset.pattern.permute.xlu0 0
      %310 = vperm.xlu0 %309, %v284
      %v311 = vpop.permute.xlu0 %310
      %314 = vset.pattern.permute.xlu0 0
      %315 = vperm.xlu0 %314, %v285
      %v316 = vpop.permute.xlu0 %315
      %319 = vset.pattern.permute.xlu0 0
      %320 = vperm.xlu0 %319, %v286
      %v321 = vpop.permute.xlu0 %320
      %324 = vset.pattern.permute.xlu0 0
      %325 = vperm.xlu0 %324, %v287
      %v326 = vpop.permute.xlu0 %325
      %vm328 = vcmask 261120
      %v330 = vsel %vm328, %v272, 0
      %v333 = vsel %vm328, %v273, 0
      %v336 = vsel %vm328, %v274, 0
      %v339 = vsel %vm328, %v275, 0
      %v342 = vsel %vm328, %v276, 0
      %v345 = vsel %vm328, %v277, 0
      %v348 = vsel %vm328, %v278, 0
      %v351 = vsel %vm328, %v279, 0
      %353 = vmatprep.subr.mxu0 0.0
      %354 = vmatpush1.msra.mxu0 0.0
      %355 = vmatprep.subr.mxu0 0.0
      %356 = vmatpush1.msra.mxu0 0.0
      %357 = vmatprep.subr.mxu0 0.0
      %358 = vmatpush1.msra.mxu0 0.0
      %359 = vmatprep.subr.mxu0 0.0
      %360 = vmatpush1.msra.mxu0 0.0
      %361 = vmatprep.subr.mxu0 0.0
      %362 = vmatpush1.msra.mxu0 0.0
      %363 = vmatprep.subr.mxu0 0.0
      %364 = vmatpush1.msra.mxu0 0.0
      %365 = vmatprep.subr.mxu0 0.0
      %366 = vmatpush1.msra.mxu0 0.0
      %367 = vmatprep.subr.mxu0 0.0
      %368 = vmatpush1.msra.mxu0 0.0
      %369 = vmatprep.subr.mxu0 0.0
      %370 = vmatpush1.msra.mxu0 0.0
      %371 = vmatprep.subr.mxu0 0.0
      %372 = vmatpush1.msra.mxu0 0.0
      %373 = vmatprep.subr.mxu0 0.0
      %374 = vmatpush1.msra.mxu0 0.0
      %375 = vmatprep.subr.mxu0 0.0
      %376 = vmatpush1.msra.mxu0 0.0
      %377 = vmatprep.subr.mxu0 %v271
      %378 = vmatpush1.msra.mxu0 %v270
      %379 = vmatprep.subr.mxu0 %v269
      %380 = vmatpush1.msra.mxu0 %v268
      %381 = vmatprep.subr.mxu0 %v267
      %382 = vmatpush1.msra.mxu0 %v266
      %383 = vmatprep.subr.mxu0 %v265
      %384 = vmatpush1.msra.mxu0 %v264
      %385 = vmatprep.subr.mxu0 0.0
      %386 = vmatpush2.msra.mxu0 0.0
      %387 = vmatprep.subr.mxu0 0.0
      %388 = vmatpush2.msra.mxu0 0.0
      %389 = vmatprep.subr.mxu0 0.0
      %390 = vmatpush2.msra.mxu0 0.0
      %391 = vmatprep.subr.mxu0 0.0
      %392 = vmatpush2.msra.mxu0 0.0
      %393 = vmatprep.subr.mxu0 0.0
      %394 = vmatpush2.msra.mxu0 0.0
      %395 = vmatprep.subr.mxu0 0.0
      %396 = vmatpush2.msra.mxu0 0.0
      %397 = vmatprep.subr.mxu0 0.0
      %398 = vmatpush2.msra.mxu0 0.0
      %399 = vmatprep.subr.mxu0 0.0
      %400 = vmatpush2.msra.mxu0 0.0
      %401 = vmatprep.subr.mxu0 0.0
      %402 = vmatpush2.msra.mxu0 0.0
      %403 = vmatprep.subr.mxu0 0.0
      %404 = vmatpush2.msra.mxu0 0.0
      %405 = vmatprep.subr.mxu0 0.0
      %406 = vmatpush2.msra.mxu0 0.0
      %407 = vmatprep.subr.mxu0 0.0
      %408 = vmatpush2.msra.mxu0 0.0
      %409 = vmatprep.subr.mxu0 0.0
      %410 = vmatpush2.msra.mxu0 0.0
      %411 = vmatprep.subr.mxu0 0.0
      %412 = vmatpush2.msra.mxu0 0.0
      %413 = vmatprep.subr.mxu0 0.0
      %414 = vmatpush2.msra.mxu0 0.0
      %415 = vmatprep.subr.mxu0 0.0
      %416 = vmatpush2.msra.mxu0 0.0
      %417 = vmatprep.mubr.f32.mxu0 0.0
      %418 = vmatmul.mubr.f32.gmra.mxu0 %v330
      %v419 = vpop.f32.mrf.mxu0
      %v420 = vadd.f32 %v291, %v419
      %v421 = vpop.f32.mrf.mxu0
      %v422 = vadd.f32 %v291, %v421
      %423 = vmatprep.mubr.f32.mxu0 0.0
      %424 = vmatmul.mubr.f32.gmra.mxu0 %v333
      %v425 = vpop.f32.mrf.mxu0
      %v426 = vadd.f32 %v296, %v425
      %v427 = vpop.f32.mrf.mxu0
      %v428 = vadd.f32 %v296, %v427
      %429 = vmatprep.mubr.f32.mxu0 0.0
      %430 = vmatmul.mubr.f32.gmra.mxu0 %v336
      %v431 = vpop.f32.mrf.mxu0
      %v432 = vadd.f32 %v301, %v431
      %v433 = vpop.f32.mrf.mxu0
      %v434 = vadd.f32 %v301, %v433
      %435 = vmatprep.mubr.f32.mxu0 0.0
      %436 = vmatmul.mubr.f32.gmra.mxu0 %v339
      %v437 = vpop.f32.mrf.mxu0
      %v438 = vadd.f32 %v306, %v437
      %v439 = vpop.f32.mrf.mxu0
      %v440 = vadd.f32 %v306, %v439
      %441 = vmatprep.mubr.f32.mxu0 0.0
      %442 = vmatmul.mubr.f32.gmra.mxu0 %v342
      %v443 = vpop.f32.mrf.mxu0
      %v444 = vadd.f32 %v311, %v443
      %v445 = vpop.f32.mrf.mxu0
      %v446 = vadd.f32 %v311, %v445
      %447 = vmatprep.mubr.f32.mxu0 0.0
      %448 = vmatmul.mubr.f32.gmra.mxu0 %v345
      %v449 = vpop.f32.mrf.mxu0
      %v450 = vadd.f32 %v316, %v449
      %v451 = vpop.f32.mrf.mxu0
      %v452 = vadd.f32 %v316, %v451
      %453 = vmatprep.mubr.f32.mxu0 0.0
      %454 = vmatmul.mubr.f32.gmra.mxu0 %v348
      %v455 = vpop.f32.mrf.mxu0
      %v456 = vadd.f32 %v321, %v455
      %v457 = vpop.f32.mrf.mxu0
      %v458 = vadd.f32 %v321, %v457
      %459 = vmatprep.mubr.f32.mxu0 0.0
      %460 = vmatmul.mubr.f32.gmra.mxu0 %v351
      %v461 = vpop.f32.mrf.mxu0
      %v462 = vadd.f32 %v326, %v461
      %v463 = vpop.f32.mrf.mxu0
      %v464 = vadd.f32 %v326, %v463
      %465 = vdwg.mxu0
      %v466 = vmul.f32 %v420, 0.5
      %v467 = vmul.f32 %v422, 0.5
      %v468 = vmul.f32 %v426, 0.5
      %v469 = vmul.f32 %v428, 0.5
      %v470 = vmul.f32 %v432, 0.5
      %v471 = vmul.f32 %v434, 0.5
      %v472 = vmul.f32 %v438, 0.5
      %v473 = vmul.f32 %v440, 0.5
      %v474 = vmul.f32 %v444, 0.5
      %v475 = vmul.f32 %v446, 0.5
      %v476 = vmul.f32 %v450, 0.5
      %v477 = vmul.f32 %v452, 0.5
      %v478 = vmul.f32 %v456, 0.5
      %v479 = vmul.f32 %v458, 0.5
      %v480 = vmul.f32 %v462, 0.5
      %v481 = vmul.f32 %v464, 0.5
      %v482 = vmul.f32 %v420, 0.70710677
      %v483 = vmul.f32 %v422, 0.70710677
      %v484 = vmul.f32 %v426, 0.70710677
      %v485 = vmul.f32 %v428, 0.70710677
      %v486 = vmul.f32 %v432, 0.70710677
      %v487 = vmul.f32 %v434, 0.70710677
      %v488 = vmul.f32 %v438, 0.70710677
      %v489 = vmul.f32 %v440, 0.70710677
      %v490 = vmul.f32 %v444, 0.70710677
      %v491 = vmul.f32 %v446, 0.70710677
      %v492 = vmul.f32 %v450, 0.70710677
      %v493 = vmul.f32 %v452, 0.70710677
      %v494 = vmul.f32 %v456, 0.70710677
      %v495 = vmul.f32 %v458, 0.70710677
      %v496 = vmul.f32 %v462, 0.70710677
      %v497 = vmul.f32 %v464, 0.70710677
      %vm498 = vcmp.lt.f32.partialorder %v482, 0.0
      %vm499 = vcmp.lt.f32.partialorder %v483, 0.0
      %vm500 = vcmp.lt.f32.partialorder %v484, 0.0
      %vm501 = vcmp.lt.f32.partialorder %v485, 0.0
      %vm502 = vcmp.lt.f32.partialorder %v486, 0.0
      %vm503 = vcmp.lt.f32.partialorder %v487, 0.0
      %vm504 = vcmp.lt.f32.partialorder %v488, 0.0
      %vm505 = vcmp.lt.f32.partialorder %v489, 0.0
      %vm506 = vcmp.lt.f32.partialorder %v490, 0.0
      %vm507 = vcmp.lt.f32.partialorder %v491, 0.0
      %vm508 = vcmp.lt.f32.partialorder %v492, 0.0
      %vm509 = vcmp.lt.f32.partialorder %v493, 0.0
      %vm510 = vcmp.lt.f32.partialorder %v494, 0.0
      %vm511 = vcmp.lt.f32.partialorder %v495, 0.0
      %vm512 = vcmp.lt.f32.partialorder %v496, 0.0
      %vm513 = vcmp.lt.f32.partialorder %v497, 0.0
      %v514 = vsel %vm498, -1.0, 1.0
      %v515 = vsel %vm499, -1.0, 1.0
      %v516 = vsel %vm500, -1.0, 1.0
      %v517 = vsel %vm501, -1.0, 1.0
      %v518 = vsel %vm502, -1.0, 1.0
      %v519 = vsel %vm503, -1.0, 1.0
      %v520 = vsel %vm504, -1.0, 1.0
      %v521 = vsel %vm505, -1.0, 1.0
      %v522 = vsel %vm506, -1.0, 1.0
      %v523 = vsel %vm507, -1.0, 1.0
      %v524 = vsel %vm508, -1.0, 1.0
      %v525 = vsel %vm509, -1.0, 1.0
      %v526 = vsel %vm510, -1.0, 1.0
      %v527 = vsel %vm511, -1.0, 1.0
      %v528 = vsel %vm512, -1.0, 1.0
      %v529 = vsel %vm513, -1.0, 1.0
      %v530 = vand.u32 2147483647, %v482
      %v531 = vand.u32 2147483647, %v483
      %v532 = vand.u32 2147483647, %v484
      %v533 = vand.u32 2147483647, %v485
      %v534 = vand.u32 2147483647, %v486
      %v535 = vand.u32 2147483647, %v487
      %v536 = vand.u32 2147483647, %v488
      %v537 = vand.u32 2147483647, %v489
      %v538 = vand.u32 2147483647, %v490
      %v539 = vand.u32 2147483647, %v491
      %v540 = vand.u32 2147483647, %v492
      %v541 = vand.u32 2147483647, %v493
      %v542 = vand.u32 2147483647, %v494
      %v543 = vand.u32 2147483647, %v495
      %v544 = vand.u32 2147483647, %v496
      %v545 = vand.u32 2147483647, %v497
      %v546 = vmul.f32 %v530, 0.3275911
      %v547 = vmul.f32 %v531, 0.3275911
      %v548 = vmul.f32 %v532, 0.3275911
      %v549 = vmul.f32 %v533, 0.3275911
      %v550 = vmul.f32 %v534, 0.3275911
      %v551 = vmul.f32 %v535, 0.3275911
      %v552 = vmul.f32 %v536, 0.3275911
      %v553 = vmul.f32 %v537, 0.3275911
      %v554 = vmul.f32 %v538, 0.3275911
      %v555 = vmul.f32 %v539, 0.3275911
      %v556 = vmul.f32 %v540, 0.3275911
      %v557 = vmul.f32 %v541, 0.3275911
      %v558 = vmul.f32 %v542, 0.3275911
      %v559 = vmul.f32 %v543, 0.3275911
      %v560 = vmul.f32 %v544, 0.3275911
      %v561 = vmul.f32 %v545, 0.3275911
      %v562 = vadd.f32 %v546, 1.0
      %v563 = vadd.f32 %v547, 1.0
      %v564 = vadd.f32 %v548, 1.0
      %v565 = vadd.f32 %v549, 1.0
      %v566 = vadd.f32 %v550, 1.0
      %v567 = vadd.f32 %v551, 1.0
      %v568 = vadd.f32 %v552, 1.0
      %v569 = vadd.f32 %v553, 1.0
      %v570 = vadd.f32 %v554, 1.0
      %v571 = vadd.f32 %v555, 1.0
      %v572 = vadd.f32 %v556, 1.0
      %v573 = vadd.f32 %v557, 1.0
      %v574 = vadd.f32 %v558, 1.0
      %v575 = vadd.f32 %v559, 1.0
      %v576 = vadd.f32 %v560, 1.0
      %v577 = vadd.f32 %v561, 1.0
      %v578 = vrcp.pop %v562
      %v579 = vrcp.pop %v563
      %v580 = vrcp.pop %v564
      %v581 = vrcp.pop %v565
      %v582 = vrcp.pop %v566
      %v583 = vrcp.pop %v567
      %v584 = vrcp.pop %v568
      %v585 = vrcp.pop %v569
      %v586 = vrcp.pop %v570
      %v587 = vrcp.pop %v571
      %v588 = vrcp.pop %v572
      %v589 = vrcp.pop %v573
      %v590 = vrcp.pop %v574
      %v591 = vrcp.pop %v575
      %v592 = vrcp.pop %v576
      %v593 = vrcp.pop %v577
      %v594 = vmul.f32 %v578, 1.0614054
      %v595 = vmul.f32 %v579, 1.0614054
      %v596 = vmul.f32 %v580, 1.0614054
      %v597 = vmul.f32 %v581, 1.0614054
      %v598 = vmul.f32 %v582, 1.0614054
      %v599 = vmul.f32 %v583, 1.0614054
      %v600 = vmul.f32 %v584, 1.0614054
      %v601 = vmul.f32 %v585, 1.0614054
      %v602 = vmul.f32 %v586, 1.0614054
      %v603 = vmul.f32 %v587, 1.0614054
      %v604 = vmul.f32 %v588, 1.0614054
      %v605 = vmul.f32 %v589, 1.0614054
      %v606 = vmul.f32 %v590, 1.0614054
      %v607 = vmul.f32 %v591, 1.0614054
      %v608 = vmul.f32 %v592, 1.0614054
      %v609 = vmul.f32 %v593, 1.0614054
      %v610 = vadd.f32 %v594, -1.4531521
      %v611 = vadd.f32 %v595, -1.4531521
      %v612 = vadd.f32 %v596, -1.4531521
      %v613 = vadd.f32 %v597, -1.4531521
      %v614 = vadd.f32 %v598, -1.4531521
      %v615 = vadd.f32 %v599, -1.4531521
      %v616 = vadd.f32 %v600, -1.4531521
      %v617 = vadd.f32 %v601, -1.4531521
      %v618 = vadd.f32 %v602, -1.4531521
      %v619 = vadd.f32 %v603, -1.4531521
      %v620 = vadd.f32 %v604, -1.4531521
      %v621 = vadd.f32 %v605, -1.4531521
      %v622 = vadd.f32 %v606, -1.4531521
      %v623 = vadd.f32 %v607, -1.4531521
      %v624 = vadd.f32 %v608, -1.4531521
      %v625 = vadd.f32 %v609, -1.4531521
      %v626 = vmul.f32 %v610, %v578
      %v627 = vmul.f32 %v611, %v579
      %v628 = vmul.f32 %v612, %v580
      %v629 = vmul.f32 %v613, %v581
      %v630 = vmul.f32 %v614, %v582
      %v631 = vmul.f32 %v615, %v583
      %v632 = vmul.f32 %v616, %v584
      %v633 = vmul.f32 %v617, %v585
      %v634 = vmul.f32 %v618, %v586
      %v635 = vmul.f32 %v619, %v587
      %v636 = vmul.f32 %v620, %v588
      %v637 = vmul.f32 %v621, %v589
      %v638 = vmul.f32 %v622, %v590
      %v639 = vmul.f32 %v623, %v591
      %v640 = vmul.f32 %v624, %v592
      %v641 = vmul.f32 %v625, %v593
      %v642 = vadd.f32 %v626, 1.4214138
      %v643 = vadd.f32 %v627, 1.4214138
      %v644 = vadd.f32 %v628, 1.4214138
      %v645 = vadd.f32 %v629, 1.4214138
      %v646 = vadd.f32 %v630, 1.4214138
      %v647 = vadd.f32 %v631, 1.4214138
      %v648 = vadd.f32 %v632, 1.4214138
      %v649 = vadd.f32 %v633, 1.4214138
      %v650 = vadd.f32 %v634, 1.4214138
      %v651 = vadd.f32 %v635, 1.4214138
      %v652 = vadd.f32 %v636, 1.4214138
      %v653 = vadd.f32 %v637, 1.4214138
      %v654 = vadd.f32 %v638, 1.4214138
      %v655 = vadd.f32 %v639, 1.4214138
      %v656 = vadd.f32 %v640, 1.4214138
      %v657 = vadd.f32 %v641, 1.4214138
      %v658 = vmul.f32 %v642, %v578
      %v659 = vmul.f32 %v643, %v579
      %v660 = vmul.f32 %v644, %v580
      %v661 = vmul.f32 %v645, %v581
      %v662 = vmul.f32 %v646, %v582
      %v663 = vmul.f32 %v647, %v583
      %v664 = vmul.f32 %v648, %v584
      %v665 = vmul.f32 %v649, %v585
      %v666 = vmul.f32 %v650, %v586
      %v667 = vmul.f32 %v651, %v587
      %v668 = vmul.f32 %v652, %v588
      %v669 = vmul.f32 %v653, %v589
      %v670 = vmul.f32 %v654, %v590
      %v671 = vmul.f32 %v655, %v591
      %v672 = vmul.f32 %v656, %v592
      %v673 = vmul.f32 %v657, %v593
      %v674 = vadd.f32 %v658, -0.28449672
      %v675 = vadd.f32 %v659, -0.28449672
      %v676 = vadd.f32 %v660, -0.28449672
      %v677 = vadd.f32 %v661, -0.28449672
      %v678 = vadd.f32 %v662, -0.28449672
      %v679 = vadd.f32 %v663, -0.28449672
      %v680 = vadd.f32 %v664, -0.28449672
      %v681 = vadd.f32 %v665, -0.28449672
      %v682 = vadd.f32 %v666, -0.28449672
      %v683 = vadd.f32 %v667, -0.28449672
      %v684 = vadd.f32 %v668, -0.28449672
      %v685 = vadd.f32 %v669, -0.28449672
      %v686 = vadd.f32 %v670, -0.28449672
      %v687 = vadd.f32 %v671, -0.28449672
      %v688 = vadd.f32 %v672, -0.28449672
      %v689 = vadd.f32 %v673, -0.28449672
      %v690 = vmul.f32 %v674, %v578
      %v691 = vmul.f32 %v675, %v579
      %v692 = vmul.f32 %v676, %v580
      %v693 = vmul.f32 %v677, %v581
      %v694 = vmul.f32 %v678, %v582
      %v695 = vmul.f32 %v679, %v583
      %v696 = vmul.f32 %v680, %v584
      %v697 = vmul.f32 %v681, %v585
      %v698 = vmul.f32 %v682, %v586
      %v699 = vmul.f32 %v683, %v587
      %v700 = vmul.f32 %v684, %v588
      %v701 = vmul.f32 %v685, %v589
      %v702 = vmul.f32 %v686, %v590
      %v703 = vmul.f32 %v687, %v591
      %v704 = vmul.f32 %v688, %v592
      %v705 = vmul.f32 %v689, %v593
      %v706 = vadd.f32 %v690, 0.2548296
      %v707 = vadd.f32 %v691, 0.2548296
      %v708 = vadd.f32 %v692, 0.2548296
      %v709 = vadd.f32 %v693, 0.2548296
      %v710 = vadd.f32 %v694, 0.2548296
      %v711 = vadd.f32 %v695, 0.2548296
      %v712 = vadd.f32 %v696, 0.2548296
      %v713 = vadd.f32 %v697, 0.2548296
      %v714 = vadd.f32 %v698, 0.2548296
      %v715 = vadd.f32 %v699, 0.2548296
      %v716 = vadd.f32 %v700, 0.2548296
      %v717 = vadd.f32 %v701, 0.2548296
      %v718 = vadd.f32 %v702, 0.2548296
      %v719 = vadd.f32 %v703, 0.2548296
      %v720 = vadd.f32 %v704, 0.2548296
      %v721 = vadd.f32 %v705, 0.2548296
      %v722 = vmul.f32 %v706, %v578
      %v723 = vmul.f32 %v707, %v579
      %v724 = vmul.f32 %v708, %v580
      %v725 = vmul.f32 %v709, %v581
      %v726 = vmul.f32 %v710, %v582
      %v727 = vmul.f32 %v711, %v583
      %v728 = vmul.f32 %v712, %v584
      %v729 = vmul.f32 %v713, %v585
      %v730 = vmul.f32 %v714, %v586
      %v731 = vmul.f32 %v715, %v587
      %v732 = vmul.f32 %v716, %v588
      %v733 = vmul.f32 %v717, %v589
      %v734 = vmul.f32 %v718, %v590
      %v735 = vmul.f32 %v719, %v591
      %v736 = vmul.f32 %v720, %v592
      %v737 = vmul.f32 %v721, %v593
      %v738 = vsub.f32 0.0, %v530
      %v739 = vsub.f32 0.0, %v531
      %v740 = vsub.f32 0.0, %v532
      %v741 = vsub.f32 0.0, %v533
      %v742 = vsub.f32 0.0, %v534
      %v743 = vsub.f32 0.0, %v535
      %v744 = vsub.f32 0.0, %v536
      %v745 = vsub.f32 0.0, %v537
      %v746 = vsub.f32 0.0, %v538
      %v747 = vsub.f32 0.0, %v539
      %v748 = vsub.f32 0.0, %v540
      %v749 = vsub.f32 0.0, %v541
      %v750 = vsub.f32 0.0, %v542
      %v751 = vsub.f32 0.0, %v543
      %v752 = vsub.f32 0.0, %v544
      %v753 = vsub.f32 0.0, %v545
      %v754 = vmul.f32 %v738, %v530
      %v755 = vmul.f32 %v739, %v531
      %v756 = vmul.f32 %v740, %v532
      %v757 = vmul.f32 %v741, %v533
      %v758 = vmul.f32 %v742, %v534
      %v759 = vmul.f32 %v743, %v535
      %v760 = vmul.f32 %v744, %v536
      %v761 = vmul.f32 %v745, %v537
      %v762 = vmul.f32 %v746, %v538
      %v763 = vmul.f32 %v747, %v539
      %v764 = vmul.f32 %v748, %v540
      %v765 = vmul.f32 %v749, %v541
      %v766 = vmul.f32 %v750, %v542
      %v767 = vmul.f32 %v751, %v543
      %v768 = vmul.f32 %v752, %v544
      %v769 = vmul.f32 %v753, %v545
      %v770 = vmul.f32 %v754, 1.442695
      %v771 = vpow.pop %v770
      %v772 = vmul.f32 %v755, 1.442695
      %v773 = vpow.pop %v772
      %v774 = vmul.f32 %v756, 1.442695
      %v775 = vpow.pop %v774
      %v776 = vmul.f32 %v757, 1.442695
      %v777 = vpow.pop %v776
      %v778 = vmul.f32 %v758, 1.442695
      %v779 = vpow.pop %v778
      %v780 = vmul.f32 %v759, 1.442695
      %v781 = vpow.pop %v780
      %v782 = vmul.f32 %v760, 1.442695
      %v783 = vpow.pop %v782
      %v784 = vmul.f32 %v761, 1.442695
      %v785 = vpow.pop %v784
      %v786 = vmul.f32 %v762, 1.442695
      %v787 = vpow.pop %v786
      %v788 = vmul.f32 %v763, 1.442695
      %v789 = vpow.pop %v788
      %v790 = vmul.f32 %v764, 1.442695
      %v791 = vpow.pop %v790
      %v792 = vmul.f32 %v765, 1.442695
      %v793 = vpow.pop %v792
      %v794 = vmul.f32 %v766, 1.442695
      %v795 = vpow.pop %v794
      %v796 = vmul.f32 %v767, 1.442695
      %v797 = vpow.pop %v796
      %v798 = vmul.f32 %v768, 1.442695
      %v799 = vpow.pop %v798
      %v800 = vmul.f32 %v769, 1.442695
      %v801 = vpow.pop %v800
      %v802 = vmul.f32 %v722, %v771
      %v803 = vmul.f32 %v723, %v773
      %v804 = vmul.f32 %v724, %v775
      %v805 = vmul.f32 %v725, %v777
      %v806 = vmul.f32 %v726, %v779
      %v807 = vmul.f32 %v727, %v781
      %v808 = vmul.f32 %v728, %v783
      %v809 = vmul.f32 %v729, %v785
      %v810 = vmul.f32 %v730, %v787
      %v811 = vmul.f32 %v731, %v789
      %v812 = vmul.f32 %v732, %v791
      %v813 = vmul.f32 %v733, %v793
      %v814 = vmul.f32 %v734, %v795
      %v815 = vmul.f32 %v735, %v797
      %v816 = vmul.f32 %v736, %v799
      %v817 = vmul.f32 %v737, %v801
      %v818 = vsub.f32 1.0, %v802
      %v819 = vsub.f32 1.0, %v803
      %v820 = vsub.f32 1.0, %v804
      %v821 = vsub.f32 1.0, %v805
      %v822 = vsub.f32 1.0, %v806
      %v823 = vsub.f32 1.0, %v807
      %v824 = vsub.f32 1.0, %v808
      %v825 = vsub.f32 1.0, %v809
      %v826 = vsub.f32 1.0, %v810
      %v827 = vsub.f32 1.0, %v811
      %v828 = vsub.f32 1.0, %v812
      %v829 = vsub.f32 1.0, %v813
      %v830 = vsub.f32 1.0, %v814
      %v831 = vsub.f32 1.0, %v815
      %v832 = vsub.f32 1.0, %v816
      %v833 = vsub.f32 1.0, %v817
      %v834 = vmul.f32 %v514, %v818
      %v835 = vmul.f32 %v515, %v819
      %v836 = vmul.f32 %v516, %v820
      %v837 = vmul.f32 %v517, %v821
      %v838 = vmul.f32 %v518, %v822
      %v839 = vmul.f32 %v519, %v823
      %v840 = vmul.f32 %v520, %v824
      %v841 = vmul.f32 %v521, %v825
      %v842 = vmul.f32 %v522, %v826
      %v843 = vmul.f32 %v523, %v827
      %v844 = vmul.f32 %v524, %v828
      %v845 = vmul.f32 %v525, %v829
      %v846 = vmul.f32 %v526, %v830
      %v847 = vmul.f32 %v527, %v831
      %v848 = vmul.f32 %v528, %v832
      %v849 = vmul.f32 %v529, %v833
      %v850 = vadd.f32 %v834, 1.0
      %v851 = vadd.f32 %v835, 1.0
      %v852 = vadd.f32 %v836, 1.0
      %v853 = vadd.f32 %v837, 1.0
      %v854 = vadd.f32 %v838, 1.0
      %v855 = vadd.f32 %v839, 1.0
      %v856 = vadd.f32 %v840, 1.0
      %v857 = vadd.f32 %v841, 1.0
      %v858 = vadd.f32 %v842, 1.0
      %v859 = vadd.f32 %v843, 1.0
      %v860 = vadd.f32 %v844, 1.0
      %v861 = vadd.f32 %v845, 1.0
      %v862 = vadd.f32 %v846, 1.0
      %v863 = vadd.f32 %v847, 1.0
      %v864 = vadd.f32 %v848, 1.0
      %v865 = vadd.f32 %v849, 1.0
      %v866 = vmul.f32 %v466, %v850
      %v867 = vmul.f32 %v467, %v851
      %v868 = vmul.f32 %v468, %v852
      %v869 = vmul.f32 %v469, %v853
      %v870 = vmul.f32 %v470, %v854
      %v871 = vmul.f32 %v471, %v855
      %v872 = vmul.f32 %v472, %v856
      %v873 = vmul.f32 %v473, %v857
      %v874 = vmul.f32 %v474, %v858
      %v875 = vmul.f32 %v475, %v859
      %v876 = vmul.f32 %v476, %v860
      %v877 = vmul.f32 %v477, %v861
      %v878 = vmul.f32 %v478, %v862
      %v879 = vmul.f32 %v479, %v863
      %v880 = vmul.f32 %v480, %v864
      %v881 = vmul.f32 %v481, %v865
      %882 = vst [vmem:[#allocation2] sm:$0xff] %v866
      %883 = vst [vmem:[#allocation2 + $0x8] sm:$0xff] %v867
      %884 = vst [vmem:[#allocation2 + $0x10] sm:$0xff] %v868
      %885 = vst [vmem:[#allocation2 + $0x18] sm:$0xff] %v869
      %886 = vst [vmem:[#allocation2 + $0x20] sm:$0xff] %v870
      %887 = vst [vmem:[#allocation2 + $0x28] sm:$0xff] %v871
      %888 = vst [vmem:[#allocation2 + $0x30] sm:$0xff] %v872
      %889 = vst [vmem:[#allocation2 + $0x38] sm:$0xff] %v873
      %890 = vst [vmem:[#allocation2 + $0x40] sm:$0xff] %v874
      %891 = vst [vmem:[#allocation2 + $0x48] sm:$0xff] %v875
      %892 = vst [vmem:[#allocation2 + $0x50] sm:$0xff] %v876
      %893 = vst [vmem:[#allocation2 + $0x58] sm:$0xff] %v877
      %894 = vst [vmem:[#allocation2 + $0x60] sm:$0xff] %v878
      %895 = vst [vmem:[#allocation2 + $0x68] sm:$0xff] %v879
      %896 = vst [vmem:[#allocation2 + $0x70] sm:$0xff] %v880
      %897 = vst [vmem:[#allocation2 + $0x78] sm:$0xff] %v881
      %v898 = vld [vmem:[%s3] sm:$0xff]
      %v899 = vld [vmem:[%s3 + $0x8] sm:$0xff]
      %v900 = vld [vmem:[%s3 + $0x10] sm:$0xff]
      %v901 = vld [vmem:[%s3 + $0x18] sm:$0xff]
      %v902 = vld [vmem:[#allocation2] sm:$0xff]
      %v903 = vld [vmem:[#allocation2 + $0x8] sm:$0xff]
      %v904 = vld [vmem:[#allocation2 + $0x10] sm:$0xff]
      %v905 = vld [vmem:[#allocation2 + $0x18] sm:$0xff]
      %v906 = vld [vmem:[#allocation2 + $0x20] sm:$0xff]
      %v907 = vld [vmem:[#allocation2 + $0x28] sm:$0xff]
      %v908 = vld [vmem:[#allocation2 + $0x30] sm:$0xff]
      %v909 = vld [vmem:[#allocation2 + $0x38] sm:$0xff]
      %v910 = vld [vmem:[#allocation2 + $0x40] sm:$0xff]
      %v911 = vld [vmem:[#allocation2 + $0x48] sm:$0xff]
      %v912 = vld [vmem:[#allocation2 + $0x50] sm:$0xff]
      %v913 = vld [vmem:[#allocation2 + $0x58] sm:$0xff]
      %v914 = vld [vmem:[#allocation2 + $0x60] sm:$0xff]
      %v915 = vld [vmem:[#allocation2 + $0x68] sm:$0xff]
      %v916 = vld [vmem:[#allocation2 + $0x70] sm:$0xff]
      %v917 = vld [vmem:[#allocation2 + $0x78] sm:$0xff]
      %v918 = vld [vmem:[%s4] sm:$0xff]
      %v919 = vld [vmem:[%s4 + $0x8] sm:$0xff]
      %v920 = vld [vmem:[%s4 + $0x10] sm:$0xff]
      %v921 = vld [vmem:[%s4 + $0x18] sm:$0xff]
      %923 = vset.pattern.permute.xlu0 0
      %924 = vperm.xlu0 %923, %v918
      %v925 = vpop.permute.xlu0 %924
      %928 = vset.pattern.permute.xlu0 0
      %929 = vperm.xlu0 %928, %v919
      %v930 = vpop.permute.xlu0 %929
      %933 = vset.pattern.permute.xlu0 0
      %934 = vperm.xlu0 %933, %v920
      %v935 = vpop.permute.xlu0 %934
      %938 = vset.pattern.permute.xlu0 0
      %939 = vperm.xlu0 %938, %v921
      %v940 = vpop.permute.xlu0 %939
      %vm942 = vcmask 523264
      %v944 = vsel %vm942, %v898, 0
      %v947 = vsel %vm942, %v899, 0
      %v950 = vsel %vm942, %v900, 0
      %v953 = vsel %vm942, %v901, 0
      %955 = vmatprep.subr.mxu0 0.0
      %956 = vmatpush1.msra.mxu0 0.0
      %957 = vmatprep.subr.mxu0 0.0
      %958 = vmatpush1.msra.mxu0 0.0
      %959 = vmatprep.subr.mxu0 0.0
      %960 = vmatpush1.msra.mxu0 0.0
      %961 = vmatprep.subr.mxu0 0.0
      %962 = vmatpush1.msra.mxu0 0.0
      %963 = vmatprep.subr.mxu0 0.0
      %964 = vmatpush1.msra.mxu0 0.0
      %965 = vmatprep.subr.mxu0 0.0
      %966 = vmatpush1.msra.mxu0 0.0
      %967 = vmatprep.subr.mxu0 0.0
      %968 = vmatpush1.msra.mxu0 0.0
      %969 = vmatprep.subr.mxu0 0.0
      %970 = vmatpush1.msra.mxu0 0.0
      %971 = vmatprep.subr.mxu0 %v917
      %972 = vmatpush1.msra.mxu0 %v916
      %973 = vmatprep.subr.mxu0 %v915
      %974 = vmatpush1.msra.mxu0 %v914
      %975 = vmatprep.subr.mxu0 %v913
      %976 = vmatpush1.msra.mxu0 %v912
      %977 = vmatprep.subr.mxu0 %v911
      %978 = vmatpush1.msra.mxu0 %v910
      %979 = vmatprep.subr.mxu0 %v909
      %980 = vmatpush1.msra.mxu0 %v908
      %981 = vmatprep.subr.mxu0 %v907
      %982 = vmatpush1.msra.mxu0 %v906
      %983 = vmatprep.subr.mxu0 %v905
      %984 = vmatpush1.msra.mxu0 %v904
      %985 = vmatprep.subr.mxu0 %v903
      %986 = vmatpush1.msra.mxu0 %v902
      %987 = vmatprep.subr.mxu0 0.0
      %988 = vmatpush2.msra.mxu0 0.0
      %989 = vmatprep.subr.mxu0 0.0
      %990 = vmatpush2.msra.mxu0 0.0
      %991 = vmatprep.subr.mxu0 0.0
      %992 = vmatpush2.msra.mxu0 0.0
      %993 = vmatprep.subr.mxu0 0.0
      %994 = vmatpush2.msra.mxu0 0.0
      %995 = vmatprep.subr.mxu0 0.0
      %996 = vmatpush2.msra.mxu0 0.0
      %997 = vmatprep.subr.mxu0 0.0
      %998 = vmatpush2.msra.mxu0 0.0
      %999 = vmatprep.subr.mxu0 0.0
      %1000 = vmatpush2.msra.mxu0 0.0
      %1001 = vmatprep.subr.mxu0 0.0
      %1002 = vmatpush2.msra.mxu0 0.0
      %1003 = vmatprep.subr.mxu0 0.0
      %1004 = vmatpush2.msra.mxu0 0.0
      %1005 = vmatprep.subr.mxu0 0.0
      %1006 = vmatpush2.msra.mxu0 0.0
      %1007 = vmatprep.subr.mxu0 0.0
      %1008 = vmatpush2.msra.mxu0 0.0
      %1009 = vmatprep.subr.mxu0 0.0
      %1010 = vmatpush2.msra.mxu0 0.0
      %1011 = vmatprep.subr.mxu0 0.0
      %1012 = vmatpush2.msra.mxu0 0.0
      %1013 = vmatprep.subr.mxu0 0.0
      %1014 = vmatpush2.msra.mxu0 0.0
      %1015 = vmatprep.subr.mxu0 0.0
      %1016 = vmatpush2.msra.mxu0 0.0
      %1017 = vmatprep.subr.mxu0 0.0
      %1018 = vmatpush2.msra.mxu0 0.0
      %1019 = vmatprep.mubr.f32.mxu0 0.0
      %1020 = vmatmul.mubr.f32.gmra.mxu0 %v944
      %v1021 = vpop.f32.mrf.mxu0
      %v1022 = vadd.f32 %v925, %v1021
      %v1023 = vpop.f32.mrf.mxu0
      %v1024 = vadd.f32 %v925, %v1023
      %1025 = vmatprep.mubr.f32.mxu0 0.0
      %1026 = vmatmul.mubr.f32.gmra.mxu0 %v947
      %v1027 = vpop.f32.mrf.mxu0
      %v1028 = vadd.f32 %v930, %v1027
      %v1029 = vpop.f32.mrf.mxu0
      %v1030 = vadd.f32 %v930, %v1029
      %1031 = vmatprep.mubr.f32.mxu0 0.0
      %1032 = vmatmul.mubr.f32.gmra.mxu0 %v950
      %v1033 = vpop.f32.mrf.mxu0
      %v1034 = vadd.f32 %v935, %v1033
      %v1035 = vpop.f32.mrf.mxu0
      %v1036 = vadd.f32 %v935, %v1035
      %1037 = vmatprep.mubr.f32.mxu0 0.0
      %1038 = vmatmul.mubr.f32.gmra.mxu0 %v953
      %v1039 = vpop.f32.mrf.mxu0
      %v1040 = vadd.f32 %v940, %v1039
      %v1041 = vpop.f32.mrf.mxu0
      %v1042 = vadd.f32 %v940, %v1041
      %1043 = vdwg.mxu0
      %1044 = vst [vmem:[%s262] sm:$0xff] %v1022
      %1045 = vst [vmem:[%s262 + $0x8] sm:$0xff] %v1024
      %1046 = vst [vmem:[%s262 + $0x10] sm:$0xff] %v1028
      %1047 = vst [vmem:[%s262 + $0x18] sm:$0xff] %v1030
      %1048 = vst [vmem:[%s262 + $0x20] sm:$0xff] %v1034
      %1049 = vst [vmem:[%s262 + $0x28] sm:$0xff] %v1036
      %1050 = vst [vmem:[%s262 + $0x30] sm:$0xff] %v1040
      %1051 = vst [vmem:[%s262 + $0x38] sm:$0xff] %v1042
      %s1052 = smul.u32 2, %s21
      %p1053 = scmp.lt.s32.totalorder %s20, 1
      %s1054 = scalar_select %p1053, %s20, 1
      %p1055 = scmp.lt.s32.totalorder %s1052, 1
      %s1056 = scalar_select %p1055, %s1052, 1
      %s1057 = smul.addr %s1054, 8
      %s1058 = sadd.s32 %s1056, %s1057
      %s1059 = smul.addr %s1058, 8
      %s1060 = scalar_lea.vmem %s5, %s1059
      // Predicated region
      $region41: #{mlp_forward.1} parent=39 // pred_check
        %p1061 = pneg %p160
      $region42: #{mlp_forward.1} parent=39 // pred_check_branch
        %1063 = sbr.rel (%p1061) target = $region44
      $region43: #{mlp_forward.1} parent=39 // pred_region
        %s1064 = smul.u32 2, %s21
      $region44: #{mlp_forward.1} parent=39 // pred_fallthru
        _
    $region40: #{mlp_forward.1} parent=5 // pred_fallthru
      _
    %p1065 = scmp.le.s32.totalorder 2, %s11
    // Predicated region
    $region45: #{mlp_forward.1} parent=5 // pred_check
      %p1066 = pneg %p1065
    $region46: #{mlp_forward.1} parent=5 // pred_check_branch
      %1068 = sbr.rel (%p1066) target = $region48
    $region47: #{mlp_forward.1} parent=5 // pred_region
      %s1069 = ssub.s32 %s11, 2
      // Predicated region
      $region49: #{mlp_forward.1} parent=47 // pred_check
        %p1070 = pneg %p166
      $region50: #{mlp_forward.1} parent=47 // pred_check_branch
        %1072 = sbr.rel (%p1070) target = $region52
      $region51: #{mlp_forward.1} parent=47 // pred_region
        %s1073 = smul.u32 2, %s23
        %p1074 = scmp.lt.s32.totalorder %s22, 1
        %s1075 = scalar_select %p1074, %s22, 1
        %p1076 = scmp.lt.s32.totalorder %s1073, 1
        %s1077 = scalar_select %p1076, %s1073, 1
        %s1078 = smul.addr %s1075, 8
        %s1079 = sadd.s32 %s1077, %s1078
        %s1080 = smul.addr %s1079, 8
        %s1081 = scalar_lea.vmem %s5, %s1080
      $region52: #{mlp_forward.1} parent=47 // pred_fallthru
        _
    $region48: #{mlp_forward.1} parent=5 // pred_fallthru
      _
  $region6: #{mlp_forward.1} parent=0 // loop_footer
    %s15 = sadd.s32 1, %s11
  $region7: #{mlp_forward.1} parent=0 // loop_footer_branch
    %10 = sbr.rel target = $region3
  $region8: #{mlp_forward.1} parent=0 // loop_exit
    _

</llo_original>
